<compile_context>
chip_gen: v6e
topology: v6e:2x2x1
jax: 0.10.0
libtpu: 0.0.40
codegen_flags: <defaults>
</compile_context>

<pallas_src>
import functools

import jax
import jax.numpy as jnp
from jax.experimental import pallas as pl
from jax.experimental.pallas import tpu as pltpu


# ---------------------------------------------------------------------------
# helpers
# ---------------------------------------------------------------------------

def _round_up(x, m):
    return (x + m - 1) // m * m


def _sublane_multiple(dtype):
    # packed-sublane minimum per dtype: f32 -> 8, bf16 -> 16, int8/fp8 -> 32
    return {4: 8, 2: 16, 1: 32}.get(jnp.dtype(dtype).itemsize, 8)


def _vmem_budget_bytes():
    try:
        cap = int(pltpu.get_tpu_info().vmem_capacity_bytes)
    except Exception:
        cap = 64 * 1024 * 1024  # conservative fallback (v7x physical VMEM)
    return (cap * 3) // 4  # leave headroom for the compiler


_TM_CAP = 256  # max rows per M tile (also the tm assumed when budgeting tk/tn)


def _select_kn_tiles(K, N, in_itemsize, budget):
    """Pick (tk, tn).  Prefer tk == K (single-shot contraction, no K grid axis)."""

    def fits(tk, tn):
        x_bytes = 2 * _TM_CAP * tk * in_itemsize           # double-buffered x tile
        w_bytes = 2 * tk * tn * in_itemsize                 # double-buffered w tile
        o_bytes = 2 * _TM_CAP * tn * 4 + _TM_CAP * tn * 4   # out block (+ f32 acc)
        return x_bytes + w_bytes + o_bytes <= budget

    tn_candidates = [N] if N <= 512 else [512, 256]
    for tn in tn_candidates:
        if fits(K, tn):
            return K, tn                                    # full-K contraction

    # Very large d_model: fall back to a K grid axis, 256-aligned (MXU width).
    tn = N if N <= 256 else 256
    tk = 4096
    while tk > 256 and not fits(tk, tn):
        tk //= 2
    return tk, tn


def prepare_weight(weight):
    """One-time relayout of an nn.Linear weight (out_features, in_features) to
    (in_features, out_features), padded to the kernel's K/N tiling (only when a
    huge d_model actually forces tiling).  Call once per parameter, reuse."""
    N, K = weight.shape
    tk, tn = _select_kn_tiles(K, N, jnp.dtype(weight.dtype).itemsize,
                              _vmem_budget_bytes())
    Kp, Np = _round_up(K, tk), _round_up(N, tn)
    w_kn = jnp.swapaxes(weight, 0, 1)                       # (K, N)
    if (Kp, Np) != (K, N):
        w_kn = jnp.pad(w_kn, ((0, Kp - K), (0, Np - N)))
    return w_kn


# ---------------------------------------------------------------------------
# kernels
# ---------------------------------------------------------------------------

def _linear_relu_kernel(x_ref, w_ref, o_ref):
    """Full-K path: one dot per grid step, fused ReLU, no accumulator."""
    o_ref[...] = jnp.maximum(
        jnp.dot(x_ref[...], w_ref[...], preferred_element_type=jnp.float32),
        0.0,
    ).astype(o_ref.dtype)


def _linear_relu_kernel_ktiled_f32(x_ref, w_ref, o_ref):
    """K-tiled fallback, f32 output: accumulate directly in the resident block."""
    k = pl.program_id(2)

    @pl.when(k == 0)
    def _():
        o_ref[...] = jnp.zeros_like(o_ref)

    o_ref[...] += jnp.dot(x_ref[...], w_ref[...], preferred_element_type=jnp.float32)

    @pl.when(k == pl.num_programs(2) - 1)
    def _():
        o_ref[...] = jnp.maximum(o_ref[...], 0.0)


def _linear_relu_kernel_ktiled_acc(x_ref, w_ref, o_ref, acc_ref):
    """K-tiled fallback, narrow (bf16) output: f32 VMEM accumulator."""
    k = pl.program_id(2)

    @pl.when(k == 0)
    def _():
        acc_ref[...] = jnp.zeros_like(acc_ref)

    acc_ref[...] += jnp.dot(x_ref[...], w_ref[...], preferred_element_type=jnp.float32)

    @pl.when(k == pl.num_programs(2) - 1)
    def _():
        o_ref[...] = jnp.maximum(acc_ref[...], 0.0).astype(o_ref.dtype)


# ---------------------------------------------------------------------------
# wrapper
# ---------------------------------------------------------------------------

@functools.partial(jax.jit, static_argnames=("out_features", "xla_fallback_min_elems"))
def basic_model_forward(x, w_kn, *, out_features=None, xla_fallback_min_elems=0):
    """relu(x @ W^T) with W supplied in prepared (in_features, out_features) layout.

    x:    (..., d_model);   w_kn: prepare_weight(weight)   (possibly K/N padded)
    Output dtype follows x.dtype (f32 in / f32 out, bf16 in / bf16 out).
    """
    K = x.shape[-1]
    lead = x.shape[:-1]
    Kp_w, Np_w = w_kn.shape
    N = out_features if out_features is not None else Np_w
    x2d = x.reshape(-1, K)
    M = x2d.shape[0]

    # Optional XLA fast path for tiny problems where pallas_call overhead
    # dominates (disabled by default so the Pallas kernel is exercised).
    if xla_fallback_min_elems and (M * K * N) < xla_fallback_min_elems:
        out = jnp.maximum(
            jnp.dot(x2d, w_kn[:K, :N], preferred_element_type=jnp.float32), 0.0)
        return out.astype(x.dtype).reshape(*lead, N)

    budget = _vmem_budget_bytes()
    in_itemsize = jnp.dtype(x.dtype).itemsize
    tk, tn = _select_kn_tiles(K, N, in_itemsize, budget)
    Kp, Np = _round_up(K, tk), _round_up(N, tn)
    assert (Kp, Np) == (Kp_w, Np_w), (
        "w_kn layout mismatch: pass prepare_weight(weight) of matching dtype/shape")

    sub = _sublane_multiple(x.dtype)
    m_sub = _round_up(M, sub)
    tm = m_sub if m_sub <= _TM_CAP else _TM_CAP   # single M tile unless M is large
    Mp = _round_up(M, tm)

    # Per-call padding: M only (cheap); K padding happens only in the rare
    # K-tiled fallback for huge d_model.
    xp = x2d
    if (Mp, Kp) != (M, K):
        xp = jnp.pad(x2d, ((0, Mp - M), (0, Kp - K)))

    out_dtype = x.dtype
    grid_m, grid_n, grid_k = Mp // tm, Np // tn, Kp // tk

    itemsize_o = jnp.dtype(out_dtype).itemsize
    w_streams = grid_m if grid_n > 1 else 1
    cost = pl.CostEstimate(
        flops=2 * Mp * Np * Kp,
        transcendentals=0,
        bytes_accessed=(Mp * Kp * in_itemsize
                        + Kp * Np * in_itemsize * w_streams
                        + Mp * Np * itemsize_o),
    )

    if grid_k == 1:
        # -------- full-K path: 2-D grid, one dot per step, fused ReLU --------
        out2d = pl.pallas_call(
            _linear_relu_kernel,
            out_shape=jax.ShapeDtypeStruct((Mp, Np), out_dtype),
            grid_spec=pltpu.PrefetchScalarGridSpec(
                num_scalar_prefetch=0,
                grid=(grid_m, grid_n),
                in_specs=[
                    pl.BlockSpec((tm, Kp), lambda i, j: (i, 0)),   # x tile
                    pl.BlockSpec((Kp, tn), lambda i, j: (0, j)),   # weight (K, N)
                ],
                out_specs=pl.BlockSpec((tm, tn), lambda i, j: (i, j)),
            ),
            compiler_params=pltpu.CompilerParams(
                dimension_semantics=("parallel", "parallel"),
                vmem_limit_bytes=int(budget),
            ),
            cost_estimate=cost,
        )(xp, w_kn)
    else:
        # -------- K-tiled fallback (very large d_model only) ------------------
        acc_in_output = out_dtype == jnp.float32
        kernel = (_linear_relu_kernel_ktiled_f32 if acc_in_output
                  else _linear_relu_kernel_ktiled_acc)
        scratch = [] if acc_in_output else [pltpu.VMEM((tm, tn), jnp.float32)]
        out2d = pl.pallas_call(
            kernel,
            out_shape=jax.ShapeDtypeStruct((Mp, Np), out_dtype),
            grid_spec=pltpu.PrefetchScalarGridSpec(
                num_scalar_prefetch=0,
                grid=(grid_m, grid_n, grid_k),
                in_specs=[
                    pl.BlockSpec((tm, tk), lambda i, j, k: (i, k)),
                    pl.BlockSpec((tk, tn), lambda i, j, k: (k, j)),
                ],
                out_specs=pl.BlockSpec((tm, tn), lambda i, j, k: (i, j)),
                scratch_shapes=scratch,
            ),
            compiler_params=pltpu.CompilerParams(
                dimension_semantics=("parallel", "parallel", "arbitrary"),
                vmem_limit_bytes=int(budget),
            ),
            cost_estimate=cost,
        )(xp, w_kn)

    if (Mp, Np) != (M, N):
        out2d = out2d[:M, :N]
    return out2d.reshape(*lead, N)


# ---------------------------------------------------------------------------
# demo / self-test
# ---------------------------------------------------------------------------

if __name__ == "__main__":
    d_model = 32
    batch, seq = 2, 8

    key = jax.random.PRNGKey(0)
    kx, kw = jax.random.split(key)

    # Deterministic "parameter init" mimicking nn.Linear's kaiming-uniform range.
    bound = 1.0 / (d_model ** 0.5)
    weight = jax.random.uniform(
        kw, (d_model, d_model), dtype=jnp.float32, minval=-bound, maxval=bound
    )
    x = jax.random.normal(kx, (batch, seq, d_model), dtype=jnp.float32)

    # --- f32 path (full-K, single grid step) ---------------------------------
    w_kn = prepare_weight(weight)                       # one-time relayout
    out = jax.block_until_ready(basic_model_forward(x, w_kn))
    ref = jnp.maximum(jnp.einsum("bsd,od->bso", x, weight), 0.0)
    assert out.shape == (batch, seq, d_model)
    assert jnp.allclose(out, ref, atol=1e-5, rtol=1e-5)

    # --- bf16 path ------------------------------------------------------------
    x_bf16 = x.astype(jnp.bfloat16)
    w_kn_bf16 = prepare_weight(weight.astype(jnp.bfloat16))
    out_bf16 = jax.block_until_ready(basic_model_forward(x_bf16, w_kn_bf16))
    ref_bf16 = jnp.maximum(
        jnp.einsum("bsd,od->bso", x_bf16.astype(jnp.float32),
                   weight.astype(jnp.bfloat16).astype(jnp.float32)), 0.0)
    assert out_bf16.dtype == jnp.bfloat16
    assert jnp.allclose(out_bf16.astype(jnp.float32), ref_bf16, atol=5e-2, rtol=5e-2)

    # --- multi-M-tile + M-padding path (d_model=128, 272 rows -> 2 tiles) -----
    d2 = 128
    k2x, k2w = jax.random.split(jax.random.PRNGKey(0), 2)
    w2 = jax.random.uniform(k2w, (d2, d2), dtype=jnp.float32,
                            minval=-1.0 / d2 ** 0.5, maxval=1.0 / d2 ** 0.5)
    x2 = jax.random.normal(k2x, (272, d2), dtype=jnp.float32)
    out2 = jax.block_until_ready(basic_model_forward(x2, prepare_weight(w2)))
    ref2 = jnp.maximum(x2 @ w2.T, 0.0)
    assert out2.shape == (272, d2)
    assert jnp.allclose(out2, ref2, atol=1e-4, rtol=1e-4)

    print("KERNEL_OK")
</pallas_src>

<mosaic_0001>
module attributes {stable_mosaic.version = 11 : i64} {
  func.func @_linear_relu_kernel(%arg0: i32, %arg1: i32, %arg2: memref<16x32xf32, #tpu.memory_space<vmem>>, %arg3: memref<32x32xf32, #tpu.memory_space<vmem>>, %arg4: memref<16x32xf32, #tpu.memory_space<vmem>>) attributes {dimension_semantics = [#tpu.dimension_semantics<parallel>, #tpu.dimension_semantics<parallel>], iteration_bounds = array<i64: 1, 1>, scalar_prefetch = 0 : i64, scratch_operands = 0 : i64, tpu.core_type = #tpu.core_type<tc>, window_params = [{transform_indices = @transform_0, window_bounds = array<i64: 16, 32>}, {transform_indices = @transform_1, window_bounds = array<i64: 32, 32>}, {transform_indices = @transform_2, window_bounds = array<i64: 16, 32>}]} {
    %c0 = arith.constant 0 : index
    %c0_0 = arith.constant 0 : index
    %0 = vector.load %arg2[%c0, %c0_0] : memref<16x32xf32, #tpu.memory_space<vmem>>, vector<16x32xf32>
    %c0_1 = arith.constant 0 : index
    %c0_2 = arith.constant 0 : index
    %1 = vector.load %arg3[%c0_1, %c0_2] : memref<32x32xf32, #tpu.memory_space<vmem>>, vector<32x32xf32>
    %cst = arith.constant dense<0.000000e+00> : vector<16x32xf32>
    %2 = tpu.matmul %0, %1, %cst {dimension_numbers = #tpu.dot_dimension_numbers<[1], [0], [0], [1], [0, 0, 1, 1], [], []>} : vector<16x32xf32>, vector<32x32xf32>, vector<16x32xf32> -> vector<16x32xf32>
    %cst_3 = arith.constant 0.000000e+00 : f32
    %3 = vector.broadcast %cst_3 : f32 to vector<16x32xf32>
    %4 = arith.maximumf %2, %3 : vector<16x32xf32>
    %c0_4 = arith.constant 0 : index
    %c0_5 = arith.constant 0 : index
    %5 = vector.load %arg4[%c0_4, %c0_5] : memref<16x32xf32, #tpu.memory_space<vmem>>, vector<16x32xf32>
    tpu.vector_store %arg4[%c0_4, %c0_5], %4 {strides = array<i32>} : memref<16x32xf32, #tpu.memory_space<vmem>>, vector<16x32xf32>,
    return
  }
  func.func @transform_0(%arg0: i32, %arg1: i32) -> (i32, i32) {
    %c0_i32 = arith.constant 0 : i32
    %c0_i32_0 = arith.constant 0 : i32
    return %arg0, %c0_i32 : i32, i32
  }
  func.func @transform_1(%arg0: i32, %arg1: i32) -> (i32, i32) {
    %c0_i32 = arith.constant 0 : i32
    %c0_i32_0 = arith.constant 0 : i32
    return %c0_i32, %arg1 : i32, i32
  }
  func.func @transform_2(%arg0: i32, %arg1: i32) -> (i32, i32) {
    %c0_i32 = arith.constant 0 : i32
    return %arg0, %arg1 : i32, i32
  }
}

</mosaic_0001>

<llo_original>
// kernel: basic_model_forward.1
$region0: #{basic_model_forward.1}
  #allocation0 [shape = 'u32[]', space=smem, size = 0x4, offset = 0x4, fixed_abs, tag = 'smem constant byte address 0x4 - core index']
  #allocation1 [shape = 'u32[144,128]{1,0:T(1,128)}', space=vmem, size = 0x12000, scoped, tag = 'internal scratch']
  %s0 = inlined_call_operand.hbm [shape: f32[16,32], index: 0, kind: input, shape index: {}]
  %s1 = inlined_call_operand.hbm [shape: f32[32,32], index: 1, kind: input, shape index: {}]
  %s2 = inlined_call_operand.hbm [shape: f32[16,32], index: 2, kind: output, shape index: {}]
  %s3 = sld [smem:[#allocation0]]
  $region26: #{basic_model_forward.1} parent=0
    _
  %s5 = ssub.s32 1, %s3
  %s6 = scalar_select 0, %s5, %s3
  $region1: #{basic_model_forward.1} parent=0
    #allocation2 [shape = 'u8[8192]{0}', space=vmem, size = 0x2000, scoped, tag = 'input window, operand 0, single buffered']
    #allocation3 [shape = 's32[1]{0}', space=sflag, size = 0x4, scoped, tag = 'scoped memory for basic_model_forward.1']
    #allocation4 [shape = 's32[1]{0}', space=sflag, size = 0x4, scoped, tag = 'scoped memory for basic_model_forward.1']
    #allocation5 [shape = 'u8[16384]{0}', space=vmem, size = 0x4000, scoped, tag = 'input window, operand 1, single buffered']
    #allocation6 [shape = 's32[1]{0}', space=sflag, size = 0x4, scoped, tag = 'scoped memory for basic_model_forward.1']
    #allocation7 [shape = 'u8[8192]{0}', space=vmem, size = 0x2000, scoped, tag = 'output window, operand 0, single buffered']
    %7 = vsyncpa [#allocation3], 0
    %8 = vsyncpa [#allocation6], 0
    %9 = vsyncpa [#allocation4], 0
    // Predicated region
    $region2: #{basic_model_forward.1} parent=1 // pred_check
      _
    $region3: #{basic_model_forward.1} parent=1 // pred_check_branch
      %11 = sbr.rel (0) target = $region5
    $region4: #{basic_model_forward.1} parent=1 // pred_region
      %s13 = ssub.s32 256, 256
      %14 = vsyncadd [#allocation3], %s13
      %s15 = sshll.u32 [#allocation2], 4
      %s16 = int_to_ptr.vmem [resolvable:$true] %s15
      %21 = dma.hbm_to_vmem [thread:$0]  %s0, 256, %s16, [#allocation3], 128, 128, 8
    $region5: #{basic_model_forward.1} parent=1 // pred_fallthru
      _
    // Predicated region
    $region6: #{basic_model_forward.1} parent=1 // pred_check
      _
    $region7: #{basic_model_forward.1} parent=1 // pred_check_branch
      %23 = sbr.rel (0) target = $region9
    $region8: #{basic_model_forward.1} parent=1 // pred_region
      %s25 = ssub.s32 512, 512
      %26 = vsyncadd [#allocation6], %s25
      %s27 = sshll.u32 [#allocation5], 4
      %s28 = int_to_ptr.vmem [resolvable:$true] %s27
      %33 = dma.hbm_to_vmem [thread:$0]  %s1, 512, %s28, [#allocation6], 128, 128, 8
    $region9: #{basic_model_forward.1} parent=1 // pred_fallthru
      _
    // Predicated region
    $region10: #{basic_model_forward.1} parent=1 // pred_check
      _
    $region11: #{basic_model_forward.1} parent=1 // pred_check_branch
      %35 = sbr.rel (0) target = $region13
    $region12: #{basic_model_forward.1} parent=1 // pred_region
      %36 = dma.done [#allocation3], 256
    $region13: #{basic_model_forward.1} parent=1 // pred_fallthru
      _
    // Predicated region
    $region14: #{basic_model_forward.1} parent=1 // pred_check
      _
    $region15: #{basic_model_forward.1} parent=1 // pred_check_branch
      %38 = sbr.rel (0) target = $region17
    $region16: #{basic_model_forward.1} parent=1 // pred_region
      %39 = dma.done [#allocation6], 512
    $region17: #{basic_model_forward.1} parent=1 // pred_fallthru
      _
    %v40 = vld [vmem:[#allocation2] sm:$0xff]
    %v41 = vld [vmem:[#allocation2 + $0x8] sm:$0xff]
    %v42 = vld [vmem:[#allocation5] sm:$0xff]
    %v43 = vld [vmem:[#allocation5 + $0x8] sm:$0xff]
    %v44 = vld [vmem:[#allocation5 + $0x10] sm:$0xff]
    %v45 = vld [vmem:[#allocation5 + $0x18] sm:$0xff]
    %vm46 = vcmask 261120
    %v48 = vsel %vm46, %v40, 0
    %v51 = vsel %vm46, %v41, 0
    %53 = vmatprep.subr.mxu0 0.0
    %54 = vmatpush1.msra.mxu0 0.0
    %55 = vmatprep.subr.mxu0 0.0
    %56 = vmatpush1.msra.mxu0 0.0
    %57 = vmatprep.subr.mxu0 0.0
    %58 = vmatpush1.msra.mxu0 0.0
    %59 = vmatprep.subr.mxu0 0.0
    %60 = vmatpush1.msra.mxu0 0.0
    %61 = vmatprep.subr.mxu0 0.0
    %62 = vmatpush1.msra.mxu0 0.0
    %63 = vmatprep.subr.mxu0 0.0
    %64 = vmatpush1.msra.mxu0 0.0
    %65 = vmatprep.subr.mxu0 0.0
    %66 = vmatpush1.msra.mxu0 0.0
    %67 = vmatprep.subr.mxu0 0.0
    %68 = vmatpush1.msra.mxu0 0.0
    %69 = vmatprep.subr.mxu0 0.0
    %70 = vmatpush1.msra.mxu0 0.0
    %71 = vmatprep.subr.mxu0 0.0
    %72 = vmatpush1.msra.mxu0 0.0
    %73 = vmatprep.subr.mxu0 0.0
    %74 = vmatpush1.msra.mxu0 0.0
    %75 = vmatprep.subr.mxu0 0.0
    %76 = vmatpush1.msra.mxu0 0.0
    %77 = vmatprep.subr.mxu0 0.0
    %78 = vmatpush1.msra.mxu0 %v45
    %79 = vmatprep.subr.mxu0 0.0
    %80 = vmatpush1.msra.mxu0 %v44
    %81 = vmatprep.subr.mxu0 0.0
    %82 = vmatpush1.msra.mxu0 %v43
    %83 = vmatprep.subr.mxu0 0.0
    %84 = vmatpush1.msra.mxu0 %v42
    %85 = vmatprep.subr.mxu0 0.0
    %86 = vmatpush2.msra.mxu0 0.0
    %87 = vmatprep.subr.mxu0 0.0
    %88 = vmatpush2.msra.mxu0 0.0
    %89 = vmatprep.subr.mxu0 0.0
    %90 = vmatpush2.msra.mxu0 0.0
    %91 = vmatprep.subr.mxu0 0.0
    %92 = vmatpush2.msra.mxu0 0.0
    %93 = vmatprep.subr.mxu0 0.0
    %94 = vmatpush2.msra.mxu0 0.0
    %95 = vmatprep.subr.mxu0 0.0
    %96 = vmatpush2.msra.mxu0 0.0
    %97 = vmatprep.subr.mxu0 0.0
    %98 = vmatpush2.msra.mxu0 0.0
    %99 = vmatprep.subr.mxu0 0.0
    %100 = vmatpush2.msra.mxu0 0.0
    %101 = vmatprep.subr.mxu0 0.0
    %102 = vmatpush2.msra.mxu0 0.0
    %103 = vmatprep.subr.mxu0 0.0
    %104 = vmatpush2.msra.mxu0 0.0
    %105 = vmatprep.subr.mxu0 0.0
    %106 = vmatpush2.msra.mxu0 0.0
    %107 = vmatprep.subr.mxu0 0.0
    %108 = vmatpush2.msra.mxu0 0.0
    %109 = vmatprep.subr.mxu0 0.0
    %110 = vmatpush2.msra.mxu0 0.0
    %111 = vmatprep.subr.mxu0 0.0
    %112 = vmatpush2.msra.mxu0 0.0
    %113 = vmatprep.subr.mxu0 0.0
    %114 = vmatpush2.msra.mxu0 0.0
    %115 = vmatprep.subr.mxu0 0.0
    %116 = vmatpush2.msra.mxu0 0.0
    %117 = vmatprep.mubr.f32.mxu0 0.0
    %118 = vmatmul.mubr.f32.gmra.mxu0 %v48
    %v119 = vpop.f32.mrf.mxu0
    %v120 = vadd.f32 0.0, %v119
    %v121 = vpop.f32.mrf.mxu0
    %122 = vmatprep.mubr.f32.mxu0 0.0
    %123 = vmatmul.mubr.f32.gmra.mxu0 %v51
    %v124 = vpop.f32.mrf.mxu0
    %v125 = vadd.f32 0.0, %v124
    %v126 = vpop.f32.mrf.mxu0
    %127 = vdwg.mxu0
    %v128 = vmax.f32 %v120, 0.0
    %v129 = vmax.f32 %v125, 0.0
    %130 = vst.msk [vmem:[#allocation7] sm:$0xff] %vm46, %v128
    %131 = vst.msk [vmem:[#allocation7 + $0x8] sm:$0xff] %vm46, %v129
    // Predicated region
    $region18: #{basic_model_forward.1} parent=1 // pred_check
      _
    $region19: #{basic_model_forward.1} parent=1 // pred_check_branch
      %133 = sbr.rel (0) target = $region21
    $region20: #{basic_model_forward.1} parent=1 // pred_region
      %s135 = ssub.s32 256, 256
      %136 = vsyncadd [#allocation4], %s135
      %s137 = sshll.u32 [#allocation7], 4
      %s138 = int_to_ptr.vmem [resolvable:$true] %s137
      %143 = dma.vmem_to_hbm [thread:$0]  %s138, 256, %s2, [#allocation4], 128, 128, 8
    $region21: #{basic_model_forward.1} parent=1 // pred_fallthru
      _
    // Predicated region
    $region22: #{basic_model_forward.1} parent=1 // pred_check
      _
    $region23: #{basic_model_forward.1} parent=1 // pred_check_branch
      %145 = sbr.rel (0) target = $region25
    $region24: #{basic_model_forward.1} parent=1 // pred_region
      %146 = dma.done [#allocation4], 256
    $region25: #{basic_model_forward.1} parent=1 // pred_fallthru
      _
    %147 = vsyncpa [#allocation3], 1
    %148 = vsyncpa [#allocation6], 1
    %149 = vsyncpa [#allocation4], 1

</llo_original>
